<compile_context>
chip_gen: v6e
topology: v6e:2x2x1
jax: 0.10.0
libtpu: 0.0.40
codegen_flags: <defaults>
</compile_context>

<pallas_src>
import jax
import jax.numpy as jnp
from jax import lax
from jax.experimental import pallas as pl
from jax.experimental.pallas import tpu as pltpu


def _gru_kernel(x_ref, h0_ref, wi_ref, wh_ref, bi_ref, bhn_ref, out_ref, hn_ref):
    """Whole-sequence GRU forward in one grid-less kernel invocation.

    x_ref   : (T*B, I)   time-major flattened input; row t*B + b holds x[b, t, :]
    h0_ref  : (B, H)     initial hidden state
    wi_ref  : (I, 3H)    fused input weights  [r|z|n]
    wh_ref  : (H, 3H)    fused hidden weights [r|z|n]
    bi_ref  : (1, 3H)    fused input-side biases [b_ir+b_hr | b_iz+b_hz | b_in]
    bhn_ref : (1, H)     hidden-side bias of the n gate (stays inside r*(...))
    out_ref : (T, B, H)  time-major output sequence (wrapper transposes to (B, T, H))
    hn_ref  : (B, H)     final hidden state
    """
    T, B, H = out_ref.shape

    wh = wh_ref[...]                                     # (H, 3H), loaded once

    # ---- Phase 1: ONE fused GEMM for all (t, b) rows. Result stays in registers.
    gi_all = (
        jnp.dot(x_ref[...], wi_ref[...], preferred_element_type=jnp.float32)
        + bi_ref[...]
    )                                                    # (T*B, 3H)

    # Hoisted broadcast (only needed inside the loop; JAX does not CSE broadcasts).
    bhn = jnp.broadcast_to(bhn_ref[...], (B, H))         # (B, H)

    # ---- Phase 2: sequential recurrence. T is small & static -> fully unrolled.
    # PyTorch GRU gate equations (gate order r, z, n):
    #   r = sigmoid(x W_ir + b_ir + h W_hr + b_hr)
    #   z = sigmoid(x W_iz + b_iz + h W_hz + b_hz)
    #   n = tanh  (x W_in + b_in + r * (h W_hn + b_hn))
    #   h' = (1 - z) * n + z * h          (computed as n + z*(h - n))
    # TODO(synk): for large T / B switch to lax.fori_loop(..., unroll=k) + a batch grid
    # axis to bound live ranges and engage v7x's second TensorCore.
    h = h0_ref[...]                                      # (B, H)
    hs = []
    for t in range(T):
        gi = gi_all[t * B:(t + 1) * B, :]                # (B, 3H) static slice of a value
        gh = jnp.dot(h, wh, preferred_element_type=jnp.float32)   # (B, 3H), one MXU dot

        r = jax.nn.sigmoid(gi[:, :H] + gh[:, :H])
        z = jax.nn.sigmoid(gi[:, H:2 * H] + gh[:, H:2 * H])
        n = jnp.tanh(gi[:, 2 * H:] + r * (gh[:, 2 * H:] + bhn))
        h = n + z * (h - n)
        hs.append(h)

    # One bulk store of the whole sequence; final hidden state written exactly once.
    out_ref[...] = jnp.stack(hs, axis=0).astype(out_ref.dtype)    # (T, B, H)
    hn_ref[...] = h.astype(hn_ref.dtype)


@jax.jit
def gru_forward(x, h0, params):
    """x: (B, T, I) batch-first, h0: (B, H).  Returns (out (B,T,H), h_n (1,B,H))."""
    B, T, I = x.shape
    H = h0.shape[-1]

    # Time-major, flattened presentation of x: free 2 KiB relayout done by XLA.
    x_flat = jnp.transpose(x, (1, 0, 2)).reshape(T * B, I)

    vmem = pl.BlockSpec(memory_space=pltpu.MemorySpace.VMEM)

    out_tbh, h_n = pl.pallas_call(
        _gru_kernel,
        out_shape=(
            jax.ShapeDtypeStruct((T, B, H), jnp.float32),
            jax.ShapeDtypeStruct((B, H), jnp.float32),
        ),
        in_specs=[vmem] * 6,
        out_specs=(vmem, vmem),
    )(x_flat, h0, params["w_i"], params["w_h"], params["b_i"], params["b_hn"])

    # Restore the external batch-first layout with a 4 KiB wrapper transpose.
    out = jnp.transpose(out_tbh, (1, 0, 2))              # (B, T, H)
    return out, h_n[None]                                # h_n: (1, B, H) like PyTorch


def init_gru_params(key, input_dim, hidden_dim):
    """Deterministic init matching nn.GRU shapes, U(-1/sqrt(H), 1/sqrt(H))."""
    k = float(hidden_dim) ** -0.5
    keys = jax.random.split(key, 12)
    u = lambda kk, shape: jax.random.uniform(kk, shape, jnp.float32, -k, k)

    w_ir, w_iz, w_in = (u(keys[i], (input_dim, hidden_dim)) for i in range(0, 3))
    w_hr, w_hz, w_hn = (u(keys[i], (hidden_dim, hidden_dim)) for i in range(3, 6))
    b_ir, b_iz, b_in = (u(keys[i], (1, hidden_dim)) for i in range(6, 9))
    b_hr, b_hz, b_hn = (u(keys[i], (1, hidden_dim)) for i in range(9, 12))

    w_i = jnp.concatenate([w_ir, w_iz, w_in], axis=1)                 # (I, 3H)
    w_h = jnp.concatenate([w_hr, w_hz, w_hn], axis=1)                 # (H, 3H)
    # r/z biases pre-summed; n-gate input bias goes with the input projection,
    # while b_hn must stay separate (it sits inside the r * (...) term).
    b_i = jnp.concatenate([b_ir + b_hr, b_iz + b_hz, b_in], axis=1)   # (1, 3H)
    return {"w_i": w_i, "w_h": w_h, "b_i": b_i, "b_hn": b_hn}


def gru_reference(x, h0, params):
    """Pure-JAX reference (lax.scan) for correctness check."""
    H = h0.shape[-1]
    wi, wh, bi, bhn = params["w_i"], params["w_h"], params["b_i"], params["b_hn"]

    def step(h, x_t):
        gi = x_t @ wi + bi
        gh = h @ wh
        r = jax.nn.sigmoid(gi[:, :H] + gh[:, :H])
        z = jax.nn.sigmoid(gi[:, H:2 * H] + gh[:, H:2 * H])
        n = jnp.tanh(gi[:, 2 * H:] + r * (gh[:, 2 * H:] + bhn))
        h_new = (1.0 - z) * n + z * h
        return h_new, h_new

    h_n, out = lax.scan(step, h0, jnp.transpose(x, (1, 0, 2)))
    return jnp.transpose(out, (1, 0, 2)), h_n[None]


if __name__ == "__main__":
    B, T, I, H = 4, 8, 16, 32   # batch, seq, input_dim, output_dim (hidden)

    key = jax.random.PRNGKey(0)
    kx, kh, kp = jax.random.split(key, 3)

    x = jax.random.normal(kx, (B, T, I), jnp.float32)
    # PyTorch forward draws h_0 = randn(batch, 1, hidden); the semantically valid initial
    # hidden state of a 1-layer GRU is (1, B, H) -> we draw a deterministic (B, H) here.
    h0 = jax.random.normal(kh, (B, H), jnp.float32)
    params = init_gru_params(kp, I, H)

    out, h_n = gru_forward(x, h0, params)
    jax.block_until_ready((out, h_n))

    ref_out, ref_hn = gru_reference(x, h0, params)
    assert out.shape == (B, T, H) and h_n.shape == (1, B, H)
    assert jnp.allclose(out, ref_out, atol=1e-5, rtol=1e-5)
    assert jnp.allclose(h_n, ref_hn, atol=1e-5, rtol=1e-5)

    print("KERNEL_OK")
</pallas_src>

<mosaic_0001>
module attributes {stable_mosaic.version = 11 : i64} {
  func.func @_gru_kernel(%arg0: memref<32x16xf32, #tpu.memory_space<vmem>>, %arg1: memref<4x32xf32, #tpu.memory_space<vmem>>, %arg2: memref<16x96xf32, #tpu.memory_space<vmem>>, %arg3: memref<32x96xf32, #tpu.memory_space<vmem>>, %arg4: memref<1x96xf32, #tpu.memory_space<vmem>>, %arg5: memref<1x32xf32, #tpu.memory_space<vmem>>, %arg6: memref<8x4x32xf32, #tpu.memory_space<vmem>>, %arg7: memref<4x32xf32, #tpu.memory_space<vmem>>) attributes {dimension_semantics = [], scalar_prefetch = 0 : i64, scratch_operands = 0 : i64, tpu.core_type = #tpu.core_type<tc>} {
    %c0 = arith.constant 0 : index
    %c0_0 = arith.constant 0 : index
    %0 = vector.load %arg3[%c0, %c0_0] : memref<32x96xf32, #tpu.memory_space<vmem>>, vector<32x96xf32>
    %c0_1 = arith.constant 0 : index
    %c0_2 = arith.constant 0 : index
    %1 = vector.load %arg0[%c0_1, %c0_2] : memref<32x16xf32, #tpu.memory_space<vmem>>, vector<32x16xf32>
    %c0_3 = arith.constant 0 : index
    %c0_4 = arith.constant 0 : index
    %2 = vector.load %arg2[%c0_3, %c0_4] : memref<16x96xf32, #tpu.memory_space<vmem>>, vector<16x96xf32>
    %cst = arith.constant dense<0.000000e+00> : vector<32x96xf32>
    %3 = tpu.matmul %1, %2, %cst {dimension_numbers = #tpu.dot_dimension_numbers<[1], [0], [0], [1], [0, 0, 1, 1], [], []>} : vector<32x16xf32>, vector<16x96xf32>, vector<32x96xf32> -> vector<32x96xf32>
    %c0_5 = arith.constant 0 : index
    %c0_6 = arith.constant 0 : index
    %4 = vector.load %arg4[%c0_5, %c0_6] : memref<1x96xf32, #tpu.memory_space<vmem>>, vector<1x96xf32>
    %5 = vector.broadcast %4 : vector<1x96xf32> to vector<32x96xf32>
    %6 = arith.addf %3, %5 : vector<32x96xf32>
    %c0_7 = arith.constant 0 : index
    %c0_8 = arith.constant 0 : index
    %7 = vector.load %arg5[%c0_7, %c0_8] : memref<1x32xf32, #tpu.memory_space<vmem>>, vector<1x32xf32>
    %8 = vector.shape_cast %7 : vector<1x32xf32> to vector<1x32xf32>
    %9 = vector.broadcast %8 : vector<1x32xf32> to vector<4x32xf32>
    %c0_9 = arith.constant 0 : index
    %c0_10 = arith.constant 0 : index
    %10 = vector.load %arg1[%c0_9, %c0_10] : memref<4x32xf32, #tpu.memory_space<vmem>>, vector<4x32xf32>
    %11 = vector.extract_strided_slice %6 {offsets = [0, 0], sizes = [4, 96], strides = [1, 1]} : vector<32x96xf32> to vector<4x96xf32>
    %cst_11 = arith.constant dense<0.000000e+00> : vector<4x96xf32>
    %12 = tpu.matmul %10, %0, %cst_11 {dimension_numbers = #tpu.dot_dimension_numbers<[1], [0], [0], [1], [0, 0, 1, 1], [], []>} : vector<4x32xf32>, vector<32x96xf32>, vector<4x96xf32> -> vector<4x96xf32>
    %13 = vector.extract_strided_slice %11 {offsets = [0, 0], sizes = [4, 32], strides = [1, 1]} : vector<4x96xf32> to vector<4x32xf32>
    %14 = vector.extract_strided_slice %12 {offsets = [0, 0], sizes = [4, 32], strides = [1, 1]} : vector<4x96xf32> to vector<4x32xf32>
    %15 = arith.addf %13, %14 : vector<4x32xf32>
    %16 = arith.negf %15 : vector<4x32xf32>
    %17 = math.exp %16 : vector<4x32xf32>
    %cst_12 = arith.constant 1.000000e+00 : f32
    %18 = vector.broadcast %cst_12 : f32 to vector<4x32xf32>
    %19 = arith.addf %18, %17 : vector<4x32xf32>
    %20 = arith.divf %18, %19 : vector<4x32xf32>
    %21 = vector.extract_strided_slice %11 {offsets = [0, 32], sizes = [4, 32], strides = [1, 1]} : vector<4x96xf32> to vector<4x32xf32>
    %22 = vector.extract_strided_slice %12 {offsets = [0, 32], sizes = [4, 32], strides = [1, 1]} : vector<4x96xf32> to vector<4x32xf32>
    %23 = arith.addf %21, %22 : vector<4x32xf32>
    %24 = arith.negf %23 : vector<4x32xf32>
    %25 = math.exp %24 : vector<4x32xf32>
    %cst_13 = arith.constant 1.000000e+00 : f32
    %26 = vector.broadcast %cst_13 : f32 to vector<4x32xf32>
    %27 = arith.addf %26, %25 : vector<4x32xf32>
    %28 = arith.divf %26, %27 : vector<4x32xf32>
    %29 = vector.extract_strided_slice %11 {offsets = [0, 64], sizes = [4, 32], strides = [1, 1]} : vector<4x96xf32> to vector<4x32xf32>
    %30 = vector.extract_strided_slice %12 {offsets = [0, 64], sizes = [4, 32], strides = [1, 1]} : vector<4x96xf32> to vector<4x32xf32>
    %31 = arith.addf %30, %9 : vector<4x32xf32>
    %32 = arith.mulf %20, %31 : vector<4x32xf32>
    %33 = arith.addf %29, %32 : vector<4x32xf32>
    %34 = math.tanh %33 : vector<4x32xf32>
    %35 = arith.subf %10, %34 : vector<4x32xf32>
    %36 = arith.mulf %28, %35 : vector<4x32xf32>
    %37 = arith.addf %34, %36 : vector<4x32xf32>
    %38 = vector.extract_strided_slice %6 {offsets = [4, 0], sizes = [4, 96], strides = [1, 1]} : vector<32x96xf32> to vector<4x96xf32>
    %cst_14 = arith.constant dense<0.000000e+00> : vector<4x96xf32>
    %39 = tpu.matmul %37, %0, %cst_14 {dimension_numbers = #tpu.dot_dimension_numbers<[1], [0], [0], [1], [0, 0, 1, 1], [], []>} : vector<4x32xf32>, vector<32x96xf32>, vector<4x96xf32> -> vector<4x96xf32>
    %40 = vector.extract_strided_slice %38 {offsets = [0, 0], sizes = [4, 32], strides = [1, 1]} : vector<4x96xf32> to vector<4x32xf32>
    %41 = vector.extract_strided_slice %39 {offsets = [0, 0], sizes = [4, 32], strides = [1, 1]} : vector<4x96xf32> to vector<4x32xf32>
    %42 = arith.addf %40, %41 : vector<4x32xf32>
    %43 = arith.negf %42 : vector<4x32xf32>
    %44 = math.exp %43 : vector<4x32xf32>
    %cst_15 = arith.constant 1.000000e+00 : f32
    %45 = vector.broadcast %cst_15 : f32 to vector<4x32xf32>
    %46 = arith.addf %45, %44 : vector<4x32xf32>
    %47 = arith.divf %45, %46 : vector<4x32xf32>
    %48 = vector.extract_strided_slice %38 {offsets = [0, 32], sizes = [4, 32], strides = [1, 1]} : vector<4x96xf32> to vector<4x32xf32>
    %49 = vector.extract_strided_slice %39 {offsets = [0, 32], sizes = [4, 32], strides = [1, 1]} : vector<4x96xf32> to vector<4x32xf32>
    %50 = arith.addf %48, %49 : vector<4x32xf32>
    %51 = arith.negf %50 : vector<4x32xf32>
    %52 = math.exp %51 : vector<4x32xf32>
    %cst_16 = arith.constant 1.000000e+00 : f32
    %53 = vector.broadcast %cst_16 : f32 to vector<4x32xf32>
    %54 = arith.addf %53, %52 : vector<4x32xf32>
    %55 = arith.divf %53, %54 : vector<4x32xf32>
    %56 = vector.extract_strided_slice %38 {offsets = [0, 64], sizes = [4, 32], strides = [1, 1]} : vector<4x96xf32> to vector<4x32xf32>
    %57 = vector.extract_strided_slice %39 {offsets = [0, 64], sizes = [4, 32], strides = [1, 1]} : vector<4x96xf32> to vector<4x32xf32>
    %58 = arith.addf %57, %9 : vector<4x32xf32>
    %59 = arith.mulf %47, %58 : vector<4x32xf32>
    %60 = arith.addf %56, %59 : vector<4x32xf32>
    %61 = math.tanh %60 : vector<4x32xf32>
    %62 = arith.subf %37, %61 : vector<4x32xf32>
    %63 = arith.mulf %55, %62 : vector<4x32xf32>
    %64 = arith.addf %61, %63 : vector<4x32xf32>
    %65 = vector.extract_strided_slice %6 {offsets = [8, 0], sizes = [4, 96], strides = [1, 1]} : vector<32x96xf32> to vector<4x96xf32>
    %cst_17 = arith.constant dense<0.000000e+00> : vector<4x96xf32>
    %66 = tpu.matmul %64, %0, %cst_17 {dimension_numbers = #tpu.dot_dimension_numbers<[1], [0], [0], [1], [0, 0, 1, 1], [], []>} : vector<4x32xf32>, vector<32x96xf32>, vector<4x96xf32> -> vector<4x96xf32>
    %67 = vector.extract_strided_slice %65 {offsets = [0, 0], sizes = [4, 32], strides = [1, 1]} : vector<4x96xf32> to vector<4x32xf32>
    %68 = vector.extract_strided_slice %66 {offsets = [0, 0], sizes = [4, 32], strides = [1, 1]} : vector<4x96xf32> to vector<4x32xf32>
    %69 = arith.addf %67, %68 : vector<4x32xf32>
    %70 = arith.negf %69 : vector<4x32xf32>
    %71 = math.exp %70 : vector<4x32xf32>
    %cst_18 = arith.constant 1.000000e+00 : f32
    %72 = vector.broadcast %cst_18 : f32 to vector<4x32xf32>
    %73 = arith.addf %72, %71 : vector<4x32xf32>
    %74 = arith.divf %72, %73 : vector<4x32xf32>
    %75 = vector.extract_strided_slice %65 {offsets = [0, 32], sizes = [4, 32], strides = [1, 1]} : vector<4x96xf32> to vector<4x32xf32>
    %76 = vector.extract_strided_slice %66 {offsets = [0, 32], sizes = [4, 32], strides = [1, 1]} : vector<4x96xf32> to vector<4x32xf32>
    %77 = arith.addf %75, %76 : vector<4x32xf32>
    %78 = arith.negf %77 : vector<4x32xf32>
    %79 = math.exp %78 : vector<4x32xf32>
    %cst_19 = arith.constant 1.000000e+00 : f32
    %80 = vector.broadcast %cst_19 : f32 to vector<4x32xf32>
    %81 = arith.addf %80, %79 : vector<4x32xf32>
    %82 = arith.divf %80, %81 : vector<4x32xf32>
    %83 = vector.extract_strided_slice %65 {offsets = [0, 64], sizes = [4, 32], strides = [1, 1]} : vector<4x96xf32> to vector<4x32xf32>
    %84 = vector.extract_strided_slice %66 {offsets = [0, 64], sizes = [4, 32], strides = [1, 1]} : vector<4x96xf32> to vector<4x32xf32>
    %85 = arith.addf %84, %9 : vector<4x32xf32>
    %86 = arith.mulf %74, %85 : vector<4x32xf32>
    %87 = arith.addf %83, %86 : vector<4x32xf32>
    %88 = math.tanh %87 : vector<4x32xf32>
    %89 = arith.subf %64, %88 : vector<4x32xf32>
    %90 = arith.mulf %82, %89 : vector<4x32xf32>
    %91 = arith.addf %88, %90 : vector<4x32xf32>
    %92 = vector.extract_strided_slice %6 {offsets = [12, 0], sizes = [4, 96], strides = [1, 1]} : vector<32x96xf32> to vector<4x96xf32>
    %cst_20 = arith.constant dense<0.000000e+00> : vector<4x96xf32>
    %93 = tpu.matmul %91, %0, %cst_20 {dimension_numbers = #tpu.dot_dimension_numbers<[1], [0], [0], [1], [0, 0, 1, 1], [], []>} : vector<4x32xf32>, vector<32x96xf32>, vector<4x96xf32> -> vector<4x96xf32>
    %94 = vector.extract_strided_slice %92 {offsets = [0, 0], sizes = [4, 32], strides = [1, 1]} : vector<4x96xf32> to vector<4x32xf32>
    %95 = vector.extract_strided_slice %93 {offsets = [0, 0], sizes = [4, 32], strides = [1, 1]} : vector<4x96xf32> to vector<4x32xf32>
    %96 = arith.addf %94, %95 : vector<4x32xf32>
    %97 = arith.negf %96 : vector<4x32xf32>
    %98 = math.exp %97 : vector<4x32xf32>
    %cst_21 = arith.constant 1.000000e+00 : f32
    %99 = vector.broadcast %cst_21 : f32 to vector<4x32xf32>
    %100 = arith.addf %99, %98 : vector<4x32xf32>
    %101 = arith.divf %99, %100 : vector<4x32xf32>
    %102 = vector.extract_strided_slice %92 {offsets = [0, 32], sizes = [4, 32], strides = [1, 1]} : vector<4x96xf32> to vector<4x32xf32>
    %103 = vector.extract_strided_slice %93 {offsets = [0, 32], sizes = [4, 32], strides = [1, 1]} : vector<4x96xf32> to vector<4x32xf32>
    %104 = arith.addf %102, %103 : vector<4x32xf32>
    %105 = arith.negf %104 : vector<4x32xf32>
    %106 = math.exp %105 : vector<4x32xf32>
    %cst_22 = arith.constant 1.000000e+00 : f32
    %107 = vector.broadcast %cst_22 : f32 to vector<4x32xf32>
    %108 = arith.addf %107, %106 : vector<4x32xf32>
    %109 = arith.divf %107, %108 : vector<4x32xf32>
    %110 = vector.extract_strided_slice %92 {offsets = [0, 64], sizes = [4, 32], strides = [1, 1]} : vector<4x96xf32> to vector<4x32xf32>
    %111 = vector.extract_strided_slice %93 {offsets = [0, 64], sizes = [4, 32], strides = [1, 1]} : vector<4x96xf32> to vector<4x32xf32>
    %112 = arith.addf %111, %9 : vector<4x32xf32>
    %113 = arith.mulf %101, %112 : vector<4x32xf32>
    %114 = arith.addf %110, %113 : vector<4x32xf32>
    %115 = math.tanh %114 : vector<4x32xf32>
    %116 = arith.subf %91, %115 : vector<4x32xf32>
    %117 = arith.mulf %109, %116 : vector<4x32xf32>
    %118 = arith.addf %115, %117 : vector<4x32xf32>
    %119 = vector.extract_strided_slice %6 {offsets = [16, 0], sizes = [4, 96], strides = [1, 1]} : vector<32x96xf32> to vector<4x96xf32>
    %cst_23 = arith.constant dense<0.000000e+00> : vector<4x96xf32>
    %120 = tpu.matmul %118, %0, %cst_23 {dimension_numbers = #tpu.dot_dimension_numbers<[1], [0], [0], [1], [0, 0, 1, 1], [], []>} : vector<4x32xf32>, vector<32x96xf32>, vector<4x96xf32> -> vector<4x96xf32>
    %121 = vector.extract_strided_slice %119 {offsets = [0, 0], sizes = [4, 32], strides = [1, 1]} : vector<4x96xf32> to vector<4x32xf32>
    %122 = vector.extract_strided_slice %120 {offsets = [0, 0], sizes = [4, 32], strides = [1, 1]} : vector<4x96xf32> to vector<4x32xf32>
    %123 = arith.addf %121, %122 : vector<4x32xf32>
    %124 = arith.negf %123 : vector<4x32xf32>
    %125 = math.exp %124 : vector<4x32xf32>
    %cst_24 = arith.constant 1.000000e+00 : f32
    %126 = vector.broadcast %cst_24 : f32 to vector<4x32xf32>
    %127 = arith.addf %126, %125 : vector<4x32xf32>
    %128 = arith.divf %126, %127 : vector<4x32xf32>
    %129 = vector.extract_strided_slice %119 {offsets = [0, 32], sizes = [4, 32], strides = [1, 1]} : vector<4x96xf32> to vector<4x32xf32>
    %130 = vector.extract_strided_slice %120 {offsets = [0, 32], sizes = [4, 32], strides = [1, 1]} : vector<4x96xf32> to vector<4x32xf32>
    %131 = arith.addf %129, %130 : vector<4x32xf32>
    %132 = arith.negf %131 : vector<4x32xf32>
    %133 = math.exp %132 : vector<4x32xf32>
    %cst_25 = arith.constant 1.000000e+00 : f32
    %134 = vector.broadcast %cst_25 : f32 to vector<4x32xf32>
    %135 = arith.addf %134, %133 : vector<4x32xf32>
    %136 = arith.divf %134, %135 : vector<4x32xf32>
    %137 = vector.extract_strided_slice %119 {offsets = [0, 64], sizes = [4, 32], strides = [1, 1]} : vector<4x96xf32> to vector<4x32xf32>
    %138 = vector.extract_strided_slice %120 {offsets = [0, 64], sizes = [4, 32], strides = [1, 1]} : vector<4x96xf32> to vector<4x32xf32>
    %139 = arith.addf %138, %9 : vector<4x32xf32>
    %140 = arith.mulf %128, %139 : vector<4x32xf32>
    %141 = arith.addf %137, %140 : vector<4x32xf32>
    %142 = math.tanh %141 : vector<4x32xf32>
    %143 = arith.subf %118, %142 : vector<4x32xf32>
    %144 = arith.mulf %136, %143 : vector<4x32xf32>
    %145 = arith.addf %142, %144 : vector<4x32xf32>
    %146 = vector.extract_strided_slice %6 {offsets = [20, 0], sizes = [4, 96], strides = [1, 1]} : vector<32x96xf32> to vector<4x96xf32>
    %cst_26 = arith.constant dense<0.000000e+00> : vector<4x96xf32>
    %147 = tpu.matmul %145, %0, %cst_26 {dimension_numbers = #tpu.dot_dimension_numbers<[1], [0], [0], [1], [0, 0, 1, 1], [], []>} : vector<4x32xf32>, vector<32x96xf32>, vector<4x96xf32> -> vector<4x96xf32>
    %148 = vector.extract_strided_slice %146 {offsets = [0, 0], sizes = [4, 32], strides = [1, 1]} : vector<4x96xf32> to vector<4x32xf32>
    %149 = vector.extract_strided_slice %147 {offsets = [0, 0], sizes = [4, 32], strides = [1, 1]} : vector<4x96xf32> to vector<4x32xf32>
    %150 = arith.addf %148, %149 : vector<4x32xf32>
    %151 = arith.negf %150 : vector<4x32xf32>
    %152 = math.exp %151 : vector<4x32xf32>
    %cst_27 = arith.constant 1.000000e+00 : f32
    %153 = vector.broadcast %cst_27 : f32 to vector<4x32xf32>
    %154 = arith.addf %153, %152 : vector<4x32xf32>
    %155 = arith.divf %153, %154 : vector<4x32xf32>
    %156 = vector.extract_strided_slice %146 {offsets = [0, 32], sizes = [4, 32], strides = [1, 1]} : vector<4x96xf32> to vector<4x32xf32>
    %157 = vector.extract_strided_slice %147 {offsets = [0, 32], sizes = [4, 32], strides = [1, 1]} : vector<4x96xf32> to vector<4x32xf32>
    %158 = arith.addf %156, %157 : vector<4x32xf32>
    %159 = arith.negf %158 : vector<4x32xf32>
    %160 = math.exp %159 : vector<4x32xf32>
    %cst_28 = arith.constant 1.000000e+00 : f32
    %161 = vector.broadcast %cst_28 : f32 to vector<4x32xf32>
    %162 = arith.addf %161, %160 : vector<4x32xf32>
    %163 = arith.divf %161, %162 : vector<4x32xf32>
    %164 = vector.extract_strided_slice %146 {offsets = [0, 64], sizes = [4, 32], strides = [1, 1]} : vector<4x96xf32> to vector<4x32xf32>
    %165 = vector.extract_strided_slice %147 {offsets = [0, 64], sizes = [4, 32], strides = [1, 1]} : vector<4x96xf32> to vector<4x32xf32>
    %166 = arith.addf %165, %9 : vector<4x32xf32>
    %167 = arith.mulf %155, %166 : vector<4x32xf32>
    %168 = arith.addf %164, %167 : vector<4x32xf32>
    %169 = math.tanh %168 : vector<4x32xf32>
    %170 = arith.subf %145, %169 : vector<4x32xf32>
    %171 = arith.mulf %163, %170 : vector<4x32xf32>
    %172 = arith.addf %169, %171 : vector<4x32xf32>
    %173 = vector.extract_strided_slice %6 {offsets = [24, 0], sizes = [4, 96], strides = [1, 1]} : vector<32x96xf32> to vector<4x96xf32>
    %cst_29 = arith.constant dense<0.000000e+00> : vector<4x96xf32>
    %174 = tpu.matmul %172, %0, %cst_29 {dimension_numbers = #tpu.dot_dimension_numbers<[1], [0], [0], [1], [0, 0, 1, 1], [], []>} : vector<4x32xf32>, vector<32x96xf32>, vector<4x96xf32> -> vector<4x96xf32>
    %175 = vector.extract_strided_slice %173 {offsets = [0, 0], sizes = [4, 32], strides = [1, 1]} : vector<4x96xf32> to vector<4x32xf32>
    %176 = vector.extract_strided_slice %174 {offsets = [0, 0], sizes = [4, 32], strides = [1, 1]} : vector<4x96xf32> to vector<4x32xf32>
    %177 = arith.addf %175, %176 : vector<4x32xf32>
    %178 = arith.negf %177 : vector<4x32xf32>
    %179 = math.exp %178 : vector<4x32xf32>
    %cst_30 = arith.constant 1.000000e+00 : f32
    %180 = vector.broadcast %cst_30 : f32 to vector<4x32xf32>
    %181 = arith.addf %180, %179 : vector<4x32xf32>
    %182 = arith.divf %180, %181 : vector<4x32xf32>
    %183 = vector.extract_strided_slice %173 {offsets = [0, 32], sizes = [4, 32], strides = [1, 1]} : vector<4x96xf32> to vector<4x32xf32>
    %184 = vector.extract_strided_slice %174 {offsets = [0, 32], sizes = [4, 32], strides = [1, 1]} : vector<4x96xf32> to vector<4x32xf32>
    %185 = arith.addf %183, %184 : vector<4x32xf32>
    %186 = arith.negf %185 : vector<4x32xf32>
    %187 = math.exp %186 : vector<4x32xf32>
    %cst_31 = arith.constant 1.000000e+00 : f32
    %188 = vector.broadcast %cst_31 : f32 to vector<4x32xf32>
    %189 = arith.addf %188, %187 : vector<4x32xf32>
    %190 = arith.divf %188, %189 : vector<4x32xf32>
    %191 = vector.extract_strided_slice %173 {offsets = [0, 64], sizes = [4, 32], strides = [1, 1]} : vector<4x96xf32> to vector<4x32xf32>
    %192 = vector.extract_strided_slice %174 {offsets = [0, 64], sizes = [4, 32], strides = [1, 1]} : vector<4x96xf32> to vector<4x32xf32>
    %193 = arith.addf %192, %9 : vector<4x32xf32>
    %194 = arith.mulf %182, %193 : vector<4x32xf32>
    %195 = arith.addf %191, %194 : vector<4x32xf32>
    %196 = math.tanh %195 : vector<4x32xf32>
    %197 = arith.subf %172, %196 : vector<4x32xf32>
    %198 = arith.mulf %190, %197 : vector<4x32xf32>
    %199 = arith.addf %196, %198 : vector<4x32xf32>
    %200 = vector.extract_strided_slice %6 {offsets = [28, 0], sizes = [4, 96], strides = [1, 1]} : vector<32x96xf32> to vector<4x96xf32>
    %cst_32 = arith.constant dense<0.000000e+00> : vector<4x96xf32>
    %201 = tpu.matmul %199, %0, %cst_32 {dimension_numbers = #tpu.dot_dimension_numbers<[1], [0], [0], [1], [0, 0, 1, 1], [], []>} : vector<4x32xf32>, vector<32x96xf32>, vector<4x96xf32> -> vector<4x96xf32>
    %202 = vector.extract_strided_slice %200 {offsets = [0, 0], sizes = [4, 32], strides = [1, 1]} : vector<4x96xf32> to vector<4x32xf32>
    %203 = vector.extract_strided_slice %201 {offsets = [0, 0], sizes = [4, 32], strides = [1, 1]} : vector<4x96xf32> to vector<4x32xf32>
    %204 = arith.addf %202, %203 : vector<4x32xf32>
    %205 = arith.negf %204 : vector<4x32xf32>
    %206 = math.exp %205 : vector<4x32xf32>
    %cst_33 = arith.constant 1.000000e+00 : f32
    %207 = vector.broadcast %cst_33 : f32 to vector<4x32xf32>
    %208 = arith.addf %207, %206 : vector<4x32xf32>
    %209 = arith.divf %207, %208 : vector<4x32xf32>
    %210 = vector.extract_strided_slice %200 {offsets = [0, 32], sizes = [4, 32], strides = [1, 1]} : vector<4x96xf32> to vector<4x32xf32>
    %211 = vector.extract_strided_slice %201 {offsets = [0, 32], sizes = [4, 32], strides = [1, 1]} : vector<4x96xf32> to vector<4x32xf32>
    %212 = arith.addf %210, %211 : vector<4x32xf32>
    %213 = arith.negf %212 : vector<4x32xf32>
    %214 = math.exp %213 : vector<4x32xf32>
    %cst_34 = arith.constant 1.000000e+00 : f32
    %215 = vector.broadcast %cst_34 : f32 to vector<4x32xf32>
    %216 = arith.addf %215, %214 : vector<4x32xf32>
    %217 = arith.divf %215, %216 : vector<4x32xf32>
    %218 = vector.extract_strided_slice %200 {offsets = [0, 64], sizes = [4, 32], strides = [1, 1]} : vector<4x96xf32> to vector<4x32xf32>
    %219 = vector.extract_strided_slice %201 {offsets = [0, 64], sizes = [4, 32], strides = [1, 1]} : vector<4x96xf32> to vector<4x32xf32>
    %220 = arith.addf %219, %9 : vector<4x32xf32>
    %221 = arith.mulf %209, %220 : vector<4x32xf32>
    %222 = arith.addf %218, %221 : vector<4x32xf32>
    %223 = math.tanh %222 : vector<4x32xf32>
    %224 = arith.subf %199, %223 : vector<4x32xf32>
    %225 = arith.mulf %217, %224 : vector<4x32xf32>
    %226 = arith.addf %223, %225 : vector<4x32xf32>
    %227 = vector.shape_cast %37 : vector<4x32xf32> to vector<1x4x32xf32>
    %228 = vector.shape_cast %64 : vector<4x32xf32> to vector<1x4x32xf32>
    %229 = vector.shape_cast %91 : vector<4x32xf32> to vector<1x4x32xf32>
    %230 = vector.shape_cast %118 : vector<4x32xf32> to vector<1x4x32xf32>
    %231 = vector.shape_cast %145 : vector<4x32xf32> to vector<1x4x32xf32>
    %232 = vector.shape_cast %172 : vector<4x32xf32> to vector<1x4x32xf32>
    %233 = vector.shape_cast %199 : vector<4x32xf32> to vector<1x4x32xf32>
    %234 = vector.shape_cast %226 : vector<4x32xf32> to vector<1x4x32xf32>
    %235 = tpu.concatenate %227, %228, %229, %230, %231, %232, %233, %234 in 0 : vector<1x4x32xf32>, vector<1x4x32xf32>, vector<1x4x32xf32>, vector<1x4x32xf32>, vector<1x4x32xf32>, vector<1x4x32xf32>, vector<1x4x32xf32>, vector<1x4x32xf32> -> vector<8x4x32xf32>
    %c0_35 = arith.constant 0 : index
    %c0_36 = arith.constant 0 : index
    %c0_37 = arith.constant 0 : index
    %236 = vector.load %arg6[%c0_35, %c0_36, %c0_37] : memref<8x4x32xf32, #tpu.memory_space<vmem>>, vector<8x4x32xf32>
    tpu.vector_store %arg6[%c0_35, %c0_36, %c0_37], %235 {strides = array<i32>} : memref<8x4x32xf32, #tpu.memory_space<vmem>>, vector<8x4x32xf32>,
    %c0_38 = arith.constant 0 : index
    %c0_39 = arith.constant 0 : index
    %237 = vector.load %arg7[%c0_38, %c0_39] : memref<4x32xf32, #tpu.memory_space<vmem>>, vector<4x32xf32>
    tpu.vector_store %arg7[%c0_38, %c0_39], %226 {strides = array<i32>} : memref<4x32xf32, #tpu.memory_space<vmem>>, vector<4x32xf32>,
    return
  }
}

</mosaic_0001>

<llo_original>
// kernel: gru_forward.1
$region0: #{gru_forward.1}
  #allocation0 [shape = 'u32[]', space=smem, size = 0x4, offset = 0x4, fixed_abs, tag = 'smem constant byte address 0x4 - core index']
  #allocation1 [shape = 'u32[144,128]{1,0:T(1,128)}', space=vmem, size = 0x12000, scoped, tag = 'internal scratch']
  %s0 = inlined_call_operand.vmem [shape: f32[32,16], index: 0, kind: input, shape index: {}]
  %s1 = inlined_call_operand.vmem [shape: f32[4,32], index: 1, kind: input, shape index: {}]
  %s2 = inlined_call_operand.vmem [shape: f32[16,96], index: 2, kind: input, shape index: {}]
  %s3 = inlined_call_operand.vmem [shape: f32[32,96], index: 3, kind: input, shape index: {}]
  %s4 = inlined_call_operand.vmem [shape: f32[1,96], index: 4, kind: input, shape index: {}]
  %s5 = inlined_call_operand.vmem [shape: f32[1,32], index: 5, kind: input, shape index: {}]
  %s6 = inlined_call_operand.vmem [shape: f32[8,4,32], index: 6, kind: output, shape index: {0}]
  %s7 = inlined_call_operand.hbm [shape: f32[4,32], index: 7, kind: output, shape index: {1}]
  %8 = xla_tuple %s6, %s7
  %s9 = sld [smem:[#allocation0]]
  $region42: #{gru_forward.1} parent=0
    _
  %s11 = ssub.s32 1, %s9
  %s12 = scalar_select 0, %s11, %s9
  $region1: #{gru_forward.1} parent=0
    #allocation2 [shape = 'u8[2048]{0}', space=vmem, size = 0x800, scoped, tag = 'output window, operand 1, single buffered']
    #allocation3 [shape = 's32[1]{0}', space=sflag, size = 0x4, scoped, tag = 'scoped memory for gru_forward.1']
    %13 = vsyncpa [#allocation3], 0
    // Predicated region
    $region2: #{gru_forward.1} parent=1 // pred_check
      _
    $region3: #{gru_forward.1} parent=1 // pred_check_branch
      %15 = sbr.rel (0) target = $region5
    $region4: #{gru_forward.1} parent=1 // pred_region
      _
    $region5: #{gru_forward.1} parent=1 // pred_fallthru
      _
    // Predicated region
    $region6: #{gru_forward.1} parent=1 // pred_check
      _
    $region7: #{gru_forward.1} parent=1 // pred_check_branch
      %17 = sbr.rel (0) target = $region9
    $region8: #{gru_forward.1} parent=1 // pred_region
      _
    $region9: #{gru_forward.1} parent=1 // pred_fallthru
      _
    // Predicated region
    $region10: #{gru_forward.1} parent=1 // pred_check
      _
    $region11: #{gru_forward.1} parent=1 // pred_check_branch
      %19 = sbr.rel (0) target = $region13
    $region12: #{gru_forward.1} parent=1 // pred_region
      _
    $region13: #{gru_forward.1} parent=1 // pred_fallthru
      _
    // Predicated region
    $region14: #{gru_forward.1} parent=1 // pred_check
      _
    $region15: #{gru_forward.1} parent=1 // pred_check_branch
      %21 = sbr.rel (0) target = $region17
    $region16: #{gru_forward.1} parent=1 // pred_region
      _
    $region17: #{gru_forward.1} parent=1 // pred_fallthru
      _
    // Predicated region
    $region18: #{gru_forward.1} parent=1 // pred_check
      _
    $region19: #{gru_forward.1} parent=1 // pred_check_branch
      %23 = sbr.rel (0) target = $region21
    $region20: #{gru_forward.1} parent=1 // pred_region
      _
    $region21: #{gru_forward.1} parent=1 // pred_fallthru
      _
    // Predicated region
    $region22: #{gru_forward.1} parent=1 // pred_check
      _
    $region23: #{gru_forward.1} parent=1 // pred_check_branch
      %25 = sbr.rel (0) target = $region25
    $region24: #{gru_forward.1} parent=1 // pred_region
      _
    $region25: #{gru_forward.1} parent=1 // pred_fallthru
      _
    %v26 = vld [vmem:[%s3] sm:$0xff]
    %v27 = vld [vmem:[%s3 + $0x8] sm:$0xff]
    %v28 = vld [vmem:[%s3 + $0x10] sm:$0xff]
    %v29 = vld [vmem:[%s3 + $0x18] sm:$0xff]
    %v30 = vld [vmem:[%s0] sm:$0xff]
    %v31 = vld [vmem:[%s0 + $0x8] sm:$0xff]
    %v32 = vld [vmem:[%s0 + $0x10] sm:$0xff]
    %v33 = vld [vmem:[%s0 + $0x18] sm:$0xff]
    %v34 = vld [vmem:[%s2] sm:$0xff]
    %v35 = vld [vmem:[%s2 + $0x8] sm:$0xff]
    %v36 = vld [vmem:[%s4] sm:$0x1]
    %v38 = vlaneseq
    %v39 = vshrl.u32 %v38, 7
    %v40 = vsub.s32 0, %v39
    %v41 = vrot.slane %v36, %v40
    %vm43 = vcmask 130048
    %v45 = vsel %vm43, %v30, 0
    %v48 = vsel %vm43, %v31, 0
    %v51 = vsel %vm43, %v32, 0
    %v54 = vsel %vm43, %v33, 0
    %56 = vmatprep.subr.mxu0 0.0
    %57 = vmatpush1.msra.mxu0 0.0
    %58 = vmatprep.subr.mxu0 0.0
    %59 = vmatpush1.msra.mxu0 0.0
    %60 = vmatprep.subr.mxu0 0.0
    %61 = vmatpush1.msra.mxu0 0.0
    %62 = vmatprep.subr.mxu0 0.0
    %63 = vmatpush1.msra.mxu0 0.0
    %64 = vmatprep.subr.mxu0 0.0
    %65 = vmatpush1.msra.mxu0 0.0
    %66 = vmatprep.subr.mxu0 0.0
    %67 = vmatpush1.msra.mxu0 0.0
    %68 = vmatprep.subr.mxu0 0.0
    %69 = vmatpush1.msra.mxu0 0.0
    %70 = vmatprep.subr.mxu0 0.0
    %71 = vmatpush1.msra.mxu0 0.0
    %72 = vmatprep.subr.mxu0 0.0
    %73 = vmatpush1.msra.mxu0 0.0
    %74 = vmatprep.subr.mxu0 0.0
    %75 = vmatpush1.msra.mxu0 0.0
    %76 = vmatprep.subr.mxu0 0.0
    %77 = vmatpush1.msra.mxu0 0.0
    %78 = vmatprep.subr.mxu0 0.0
    %79 = vmatpush1.msra.mxu0 0.0
    %80 = vmatprep.subr.mxu0 0.0
    %81 = vmatpush1.msra.mxu0 0.0
    %82 = vmatprep.subr.mxu0 0.0
    %83 = vmatpush1.msra.mxu0 0.0
    %84 = vmatprep.subr.mxu0 0.0
    %85 = vmatpush1.msra.mxu0 %v35
    %86 = vmatprep.subr.mxu0 0.0
    %87 = vmatpush1.msra.mxu0 %v34
    %88 = vmatprep.subr.mxu0 0.0
    %89 = vmatpush2.msra.mxu0 0.0
    %90 = vmatprep.subr.mxu0 0.0
    %91 = vmatpush2.msra.mxu0 0.0
    %92 = vmatprep.subr.mxu0 0.0
    %93 = vmatpush2.msra.mxu0 0.0
    %94 = vmatprep.subr.mxu0 0.0
    %95 = vmatpush2.msra.mxu0 0.0
    %96 = vmatprep.subr.mxu0 0.0
    %97 = vmatpush2.msra.mxu0 0.0
    %98 = vmatprep.subr.mxu0 0.0
    %99 = vmatpush2.msra.mxu0 0.0
    %100 = vmatprep.subr.mxu0 0.0
    %101 = vmatpush2.msra.mxu0 0.0
    %102 = vmatprep.subr.mxu0 0.0
    %103 = vmatpush2.msra.mxu0 0.0
    %104 = vmatprep.subr.mxu0 0.0
    %105 = vmatpush2.msra.mxu0 0.0
    %106 = vmatprep.subr.mxu0 0.0
    %107 = vmatpush2.msra.mxu0 0.0
    %108 = vmatprep.subr.mxu0 0.0
    %109 = vmatpush2.msra.mxu0 0.0
    %110 = vmatprep.subr.mxu0 0.0
    %111 = vmatpush2.msra.mxu0 0.0
    %112 = vmatprep.subr.mxu0 0.0
    %113 = vmatpush2.msra.mxu0 0.0
    %114 = vmatprep.subr.mxu0 0.0
    %115 = vmatpush2.msra.mxu0 0.0
    %116 = vmatprep.subr.mxu0 0.0
    %117 = vmatpush2.msra.mxu0 0.0
    %118 = vmatprep.subr.mxu0 0.0
    %119 = vmatpush2.msra.mxu0 0.0
    %120 = vmatprep.mubr.f32.mxu0 0.0
    %121 = vmatmul.mubr.f32.gmra.mxu0 %v45
    %v122 = vpop.f32.mrf.mxu0
    %v123 = vadd.f32 %v41, %v122
    %v124 = vpop.f32.mrf.mxu0
    %125 = vmatprep.mubr.f32.mxu0 0.0
    %126 = vmatmul.mubr.f32.gmra.mxu0 %v48
    %v127 = vpop.f32.mrf.mxu0
    %v128 = vadd.f32 %v41, %v127
    %v129 = vpop.f32.mrf.mxu0
    %130 = vmatprep.mubr.f32.mxu0 0.0
    %131 = vmatmul.mubr.f32.gmra.mxu0 %v51
    %v132 = vpop.f32.mrf.mxu0
    %v133 = vadd.f32 %v41, %v132
    %v134 = vpop.f32.mrf.mxu0
    %135 = vmatprep.mubr.f32.mxu0 0.0
    %136 = vmatmul.mubr.f32.gmra.mxu0 %v54
    %v137 = vpop.f32.mrf.mxu0
    %v138 = vadd.f32 %v41, %v137
    %v139 = vpop.f32.mrf.mxu0
    %140 = vdwg.mxu0
    %v141 = vld [vmem:[%s5] sm:$0x1]
    %v143 = vlaneseq
    %v144 = vshrl.u32 %v143, 7
    %v145 = vsub.s32 0, %v144
    %v146 = vrot.slane %v141, %v145
    %v147 = vld [vmem:[%s1] sm:$0xf]
    %vm148 = vcmask 261120
    %v150 = vsel %vm148, %v147, 0
    %152 = vmatprep.subr.mxu0 0.0
    %153 = vmatpush1.msra.mxu0 0.0
    %154 = vmatprep.subr.mxu0 0.0
    %155 = vmatpush1.msra.mxu0 0.0
    %156 = vmatprep.subr.mxu0 0.0
    %157 = vmatpush1.msra.mxu0 0.0
    %158 = vmatprep.subr.mxu0 0.0
    %159 = vmatpush1.msra.mxu0 0.0
    %160 = vmatprep.subr.mxu0 0.0
    %161 = vmatpush1.msra.mxu0 0.0
    %162 = vmatprep.subr.mxu0 0.0
    %163 = vmatpush1.msra.mxu0 0.0
    %164 = vmatprep.subr.mxu0 0.0
    %165 = vmatpush1.msra.mxu0 0.0
    %166 = vmatprep.subr.mxu0 0.0
    %167 = vmatpush1.msra.mxu0 0.0
    %168 = vmatprep.subr.mxu0 0.0
    %169 = vmatpush1.msra.mxu0 0.0
    %170 = vmatprep.subr.mxu0 0.0
    %171 = vmatpush1.msra.mxu0 0.0
    %172 = vmatprep.subr.mxu0 0.0
    %173 = vmatpush1.msra.mxu0 0.0
    %174 = vmatprep.subr.mxu0 0.0
    %175 = vmatpush1.msra.mxu0 0.0
    %176 = vmatprep.subr.mxu0 0.0
    %177 = vmatpush1.msra.mxu0 %v29
    %178 = vmatprep.subr.mxu0 0.0
    %179 = vmatpush1.msra.mxu0 %v28
    %180 = vmatprep.subr.mxu0 0.0
    %181 = vmatpush1.msra.mxu0 %v27
    %182 = vmatprep.subr.mxu0 0.0
    %183 = vmatpush1.msra.mxu0 %v26
    %184 = vmatprep.subr.mxu0 0.0
    %185 = vmatpush2.msra.mxu0 0.0
    %186 = vmatprep.subr.mxu0 0.0
    %187 = vmatpush2.msra.mxu0 0.0
    %188 = vmatprep.subr.mxu0 0.0
    %189 = vmatpush2.msra.mxu0 0.0
    %190 = vmatprep.subr.mxu0 0.0
    %191 = vmatpush2.msra.mxu0 0.0
    %192 = vmatprep.subr.mxu0 0.0
    %193 = vmatpush2.msra.mxu0 0.0
    %194 = vmatprep.subr.mxu0 0.0
    %195 = vmatpush2.msra.mxu0 0.0
    %196 = vmatprep.subr.mxu0 0.0
    %197 = vmatpush2.msra.mxu0 0.0
    %198 = vmatprep.subr.mxu0 0.0
    %199 = vmatpush2.msra.mxu0 0.0
    %200 = vmatprep.subr.mxu0 0.0
    %201 = vmatpush2.msra.mxu0 0.0
    %202 = vmatprep.subr.mxu0 0.0
    %203 = vmatpush2.msra.mxu0 0.0
    %204 = vmatprep.subr.mxu0 0.0
    %205 = vmatpush2.msra.mxu0 0.0
    %206 = vmatprep.subr.mxu0 0.0
    %207 = vmatpush2.msra.mxu0 0.0
    %208 = vmatprep.subr.mxu0 0.0
    %209 = vmatpush2.msra.mxu0 0.0
    %210 = vmatprep.subr.mxu0 0.0
    %211 = vmatpush2.msra.mxu0 0.0
    %212 = vmatprep.subr.mxu0 0.0
    %213 = vmatpush2.msra.mxu0 0.0
    %214 = vmatprep.subr.mxu0 0.0
    %215 = vmatpush2.msra.mxu0 0.0
    %216 = vmatprep.mubr.f32.mxu0 0.0
    %217 = vmatmul.mubr.f32.gmra.mxu0 %v150
    %v218 = vpop.f32.mrf.mxu0
    %v219 = vadd.f32 0.0, %v218
    %v220 = vpop.f32.mrf.mxu0
    %221 = vdwg.mxu0
    %v222 = vadd.f32 %v123, %v219
    %v223 = vxor.u32 %v222, 2147483648
    %v224 = vmul.f32 %v223, 1.442695
    %v225 = vpow.pop %v224
    %v226 = vadd.f32 %v225, 1.0
    %v227 = vrcp.pop %v226
    %v228 = vmul.f32 1.0, %v227
    %229 = vrot.lane.b32.xlu0 %v146, 64
    %v230 = vpop.permute.xlu0 %229
    %v232 = vadd.f32 %v219, %v230
    %234 = vrot.lane.b32.xlu0 %v232, 64
    %v235 = vpop.permute.xlu0 %234
    %v237 = vmul.f32 %v228, %v235
    %239 = vrot.lane.b32.xlu0 %v237, 64
    %v240 = vpop.permute.xlu0 %239
    %v242 = vadd.f32 %v123, %v240
    %v243 = vtanh.pop %v242
    %245 = vrot.lane.b32.xlu0 %v243, 64
    %v246 = vpop.permute.xlu0 %245
    %v248 = vsub.f32 %v147, %v246
    %250 = vrot.lane.b32.xlu0 %v248, 32
    %v251 = vpop.permute.xlu0 %250
    %v253 = vmul.f32 %v228, %v251
    %255 = vrot.lane.b32.xlu0 %v253, 32
    %v256 = vpop.permute.xlu0 %255
    %v258 = vadd.f32 %v243, %v256
    %260 = vrot.lane.b32.xlu0 %v258, 64
    %v261 = vpop.permute.xlu0 %260
    %v262 = vsel %vm148, %v261, 0
    %264 = vmatprep.subr.mxu0 0.0
    %265 = vmatpush1.msra.mxu0 0.0
    %266 = vmatprep.subr.mxu0 0.0
    %267 = vmatpush1.msra.mxu0 0.0
    %268 = vmatprep.subr.mxu0 0.0
    %269 = vmatpush1.msra.mxu0 0.0
    %270 = vmatprep.subr.mxu0 0.0
    %271 = vmatpush1.msra.mxu0 0.0
    %272 = vmatprep.subr.mxu0 0.0
    %273 = vmatpush1.msra.mxu0 0.0
    %274 = vmatprep.subr.mxu0 0.0
    %275 = vmatpush1.msra.mxu0 0.0
    %276 = vmatprep.subr.mxu0 0.0
    %277 = vmatpush1.msra.mxu0 0.0
    %278 = vmatprep.subr.mxu0 0.0
    %279 = vmatpush1.msra.mxu0 0.0
    %280 = vmatprep.subr.mxu0 0.0
    %281 = vmatpush1.msra.mxu0 0.0
    %282 = vmatprep.subr.mxu0 0.0
    %283 = vmatpush1.msra.mxu0 0.0
    %284 = vmatprep.subr.mxu0 0.0
    %285 = vmatpush1.msra.mxu0 0.0
    %286 = vmatprep.subr.mxu0 0.0
    %287 = vmatpush1.msra.mxu0 0.0
    %288 = vmatprep.subr.mxu0 0.0
    %289 = vmatpush1.msra.mxu0 %v29
    %290 = vmatprep.subr.mxu0 0.0
    %291 = vmatpush1.msra.mxu0 %v28
    %292 = vmatprep.subr.mxu0 0.0
    %293 = vmatpush1.msra.mxu0 %v27
    %294 = vmatprep.subr.mxu0 0.0
    %295 = vmatpush1.msra.mxu0 %v26
    %296 = vmatprep.subr.mxu0 0.0
    %297 = vmatpush2.msra.mxu0 0.0
    %298 = vmatprep.subr.mxu0 0.0
    %299 = vmatpush2.msra.mxu0 0.0
    %300 = vmatprep.subr.mxu0 0.0
    %301 = vmatpush2.msra.mxu0 0.0
    %302 = vmatprep.subr.mxu0 0.0
    %303 = vmatpush2.msra.mxu0 0.0
    %304 = vmatprep.subr.mxu0 0.0
    %305 = vmatpush2.msra.mxu0 0.0
    %306 = vmatprep.subr.mxu0 0.0
    %307 = vmatpush2.msra.mxu0 0.0
    %308 = vmatprep.subr.mxu0 0.0
    %309 = vmatpush2.msra.mxu0 0.0
    %310 = vmatprep.subr.mxu0 0.0
    %311 = vmatpush2.msra.mxu0 0.0
    %312 = vmatprep.subr.mxu0 0.0
    %313 = vmatpush2.msra.mxu0 0.0
    %314 = vmatprep.subr.mxu0 0.0
    %315 = vmatpush2.msra.mxu0 0.0
    %316 = vmatprep.subr.mxu0 0.0
    %317 = vmatpush2.msra.mxu0 0.0
    %318 = vmatprep.subr.mxu0 0.0
    %319 = vmatpush2.msra.mxu0 0.0
    %320 = vmatprep.subr.mxu0 0.0
    %321 = vmatpush2.msra.mxu0 0.0
    %322 = vmatprep.subr.mxu0 0.0
    %323 = vmatpush2.msra.mxu0 0.0
    %324 = vmatprep.subr.mxu0 0.0
    %325 = vmatpush2.msra.mxu0 0.0
    %326 = vmatprep.subr.mxu0 0.0
    %327 = vmatpush2.msra.mxu0 0.0
    %328 = vmatprep.mubr.f32.mxu0 0.0
    %329 = vmatmul.mubr.f32.gmra.mxu0 %v262
    %v330 = vpop.f32.mrf.mxu0
    %v331 = vadd.f32 0.0, %v330
    %v332 = vpop.f32.mrf.mxu0
    %333 = vdwg.mxu0
    %v335 = vrot.slane %v331, 4
    %v337 = vadd.f32 %v123, %v335
    %v338 = vxor.u32 %v337, 2147483648
    %v339 = vmul.f32 %v338, 1.442695
    %v340 = vpow.pop %v339
    %v341 = vadd.f32 %v340, 1.0
    %v342 = vrcp.pop %v341
    %v343 = vmul.f32 1.0, %v342
    %v344 = vadd.f32 %v331, %v230
    %v346 = vrot.slane %v344, 4
    %347 = vrot.lane.b32.xlu0 %v346, 64
    %v348 = vpop.permute.xlu0 %347
    %v350 = vmul.f32 %v343, %v348
    %352 = vrot.lane.b32.xlu0 %v350, 64
    %v353 = vpop.permute.xlu0 %352
    %v355 = vadd.f32 %v123, %v353
    %v356 = vtanh.pop %v355
    %v358 = vrot.slane %v356, 4
    %v360 = vsub.f32 %v258, %v358
    %v362 = vrot.slane %v360, 4
    %363 = vrot.lane.b32.xlu0 %v362, 96
    %v364 = vpop.permute.xlu0 %363
    %v366 = vmul.f32 %v343, %v364
    %368 = vrot.lane.b32.xlu0 %v366, 32
    %v369 = vpop.permute.xlu0 %368
    %v371 = vadd.f32 %v356, %v369
    %v373 = vrot.slane %v371, 4
    %374 = vrot.lane.b32.xlu0 %v373, 64
    %v375 = vpop.permute.xlu0 %374
    %v376 = vsel %vm148, %v375, 0
    %378 = vmatprep.subr.mxu0 0.0
    %379 = vmatpush1.msra.mxu0 0.0
    %380 = vmatprep.subr.mxu0 0.0
    %381 = vmatpush1.msra.mxu0 0.0
    %382 = vmatprep.subr.mxu0 0.0
    %383 = vmatpush1.msra.mxu0 0.0
    %384 = vmatprep.subr.mxu0 0.0
    %385 = vmatpush1.msra.mxu0 0.0
    %386 = vmatprep.subr.mxu0 0.0
    %387 = vmatpush1.msra.mxu0 0.0
    %388 = vmatprep.subr.mxu0 0.0
    %389 = vmatpush1.msra.mxu0 0.0
    %390 = vmatprep.subr.mxu0 0.0
    %391 = vmatpush1.msra.mxu0 0.0
    %392 = vmatprep.subr.mxu0 0.0
    %393 = vmatpush1.msra.mxu0 0.0
    %394 = vmatprep.subr.mxu0 0.0
    %395 = vmatpush1.msra.mxu0 0.0
    %396 = vmatprep.subr.mxu0 0.0
    %397 = vmatpush1.msra.mxu0 0.0
    %398 = vmatprep.subr.mxu0 0.0
    %399 = vmatpush1.msra.mxu0 0.0
    %400 = vmatprep.subr.mxu0 0.0
    %401 = vmatpush1.msra.mxu0 0.0
    %402 = vmatprep.subr.mxu0 0.0
    %403 = vmatpush1.msra.mxu0 %v29
    %404 = vmatprep.subr.mxu0 0.0
    %405 = vmatpush1.msra.mxu0 %v28
    %406 = vmatprep.subr.mxu0 0.0
    %407 = vmatpush1.msra.mxu0 %v27
    %408 = vmatprep.subr.mxu0 0.0
    %409 = vmatpush1.msra.mxu0 %v26
    %410 = vmatprep.subr.mxu0 0.0
    %411 = vmatpush2.msra.mxu0 0.0
    %412 = vmatprep.subr.mxu0 0.0
    %413 = vmatpush2.msra.mxu0 0.0
    %414 = vmatprep.subr.mxu0 0.0
    %415 = vmatpush2.msra.mxu0 0.0
    %416 = vmatprep.subr.mxu0 0.0
    %417 = vmatpush2.msra.mxu0 0.0
    %418 = vmatprep.subr.mxu0 0.0
    %419 = vmatpush2.msra.mxu0 0.0
    %420 = vmatprep.subr.mxu0 0.0
    %421 = vmatpush2.msra.mxu0 0.0
    %422 = vmatprep.subr.mxu0 0.0
    %423 = vmatpush2.msra.mxu0 0.0
    %424 = vmatprep.subr.mxu0 0.0
    %425 = vmatpush2.msra.mxu0 0.0
    %426 = vmatprep.subr.mxu0 0.0
    %427 = vmatpush2.msra.mxu0 0.0
    %428 = vmatprep.subr.mxu0 0.0
    %429 = vmatpush2.msra.mxu0 0.0
    %430 = vmatprep.subr.mxu0 0.0
    %431 = vmatpush2.msra.mxu0 0.0
    %432 = vmatprep.subr.mxu0 0.0
    %433 = vmatpush2.msra.mxu0 0.0
    %434 = vmatprep.subr.mxu0 0.0
    %435 = vmatpush2.msra.mxu0 0.0
    %436 = vmatprep.subr.mxu0 0.0
    %437 = vmatpush2.msra.mxu0 0.0
    %438 = vmatprep.subr.mxu0 0.0
    %439 = vmatpush2.msra.mxu0 0.0
    %440 = vmatprep.subr.mxu0 0.0
    %441 = vmatpush2.msra.mxu0 0.0
    %442 = vmatprep.mubr.f32.mxu0 0.0
    %443 = vmatmul.mubr.f32.gmra.mxu0 %v376
    %v444 = vpop.f32.mrf.mxu0
    %v445 = vadd.f32 0.0, %v444
    %v446 = vpop.f32.mrf.mxu0
    %447 = vdwg.mxu0
    %v448 = vadd.f32 %v128, %v445
    %v449 = vxor.u32 %v448, 2147483648
    %v450 = vmul.f32 %v449, 1.442695
    %v451 = vpow.pop %v450
    %v452 = vadd.f32 %v451, 1.0
    %v453 = vrcp.pop %v452
    %v454 = vmul.f32 1.0, %v453
    %v455 = vadd.f32 %v445, %v230
    %457 = vrot.lane.b32.xlu0 %v455, 64
    %v458 = vpop.permute.xlu0 %457
    %v460 = vmul.f32 %v454, %v458
    %462 = vrot.lane.b32.xlu0 %v460, 64
    %v463 = vpop.permute.xlu0 %462
    %v465 = vadd.f32 %v128, %v463
    %v466 = vtanh.pop %v465
    %v468 = vrot.slane %v466, 4
    %v470 = vsub.f32 %v371, %v468
    %v472 = vrot.slane %v470, 4
    %473 = vrot.lane.b32.xlu0 %v472, 96
    %v474 = vpop.permute.xlu0 %473
    %v476 = vmul.f32 %v454, %v474
    %478 = vrot.lane.b32.xlu0 %v476, 32
    %v479 = vpop.permute.xlu0 %478
    %v481 = vadd.f32 %v466, %v479
    %483 = vrot.lane.b32.xlu0 %v481, 64
    %v484 = vpop.permute.xlu0 %483
    %v485 = vsel %vm148, %v484, 0
    %487 = vmatprep.subr.mxu0 0.0
    %488 = vmatpush1.msra.mxu0 0.0
    %489 = vmatprep.subr.mxu0 0.0
    %490 = vmatpush1.msra.mxu0 0.0
    %491 = vmatprep.subr.mxu0 0.0
    %492 = vmatpush1.msra.mxu0 0.0
    %493 = vmatprep.subr.mxu0 0.0
    %494 = vmatpush1.msra.mxu0 0.0
    %495 = vmatprep.subr.mxu0 0.0
    %496 = vmatpush1.msra.mxu0 0.0
    %497 = vmatprep.subr.mxu0 0.0
    %498 = vmatpush1.msra.mxu0 0.0
    %499 = vmatprep.subr.mxu0 0.0
    %500 = vmatpush1.msra.mxu0 0.0
    %501 = vmatprep.subr.mxu0 0.0
    %502 = vmatpush1.msra.mxu0 0.0
    %503 = vmatprep.subr.mxu0 0.0
    %504 = vmatpush1.msra.mxu0 0.0
    %505 = vmatprep.subr.mxu0 0.0
    %506 = vmatpush1.msra.mxu0 0.0
    %507 = vmatprep.subr.mxu0 0.0
    %508 = vmatpush1.msra.mxu0 0.0
    %509 = vmatprep.subr.mxu0 0.0
    %510 = vmatpush1.msra.mxu0 0.0
    %511 = vmatprep.subr.mxu0 0.0
    %512 = vmatpush1.msra.mxu0 %v29
    %513 = vmatprep.subr.mxu0 0.0
    %514 = vmatpush1.msra.mxu0 %v28
    %515 = vmatprep.subr.mxu0 0.0
    %516 = vmatpush1.msra.mxu0 %v27
    %517 = vmatprep.subr.mxu0 0.0
    %518 = vmatpush1.msra.mxu0 %v26
    %519 = vmatprep.subr.mxu0 0.0
    %520 = vmatpush2.msra.mxu0 0.0
    %521 = vmatprep.subr.mxu0 0.0
    %522 = vmatpush2.msra.mxu0 0.0
    %523 = vmatprep.subr.mxu0 0.0
    %524 = vmatpush2.msra.mxu0 0.0
    %525 = vmatprep.subr.mxu0 0.0
    %526 = vmatpush2.msra.mxu0 0.0
    %527 = vmatprep.subr.mxu0 0.0
    %528 = vmatpush2.msra.mxu0 0.0
    %529 = vmatprep.subr.mxu0 0.0
    %530 = vmatpush2.msra.mxu0 0.0
    %531 = vmatprep.subr.mxu0 0.0
    %532 = vmatpush2.msra.mxu0 0.0
    %533 = vmatprep.subr.mxu0 0.0
    %534 = vmatpush2.msra.mxu0 0.0
    %535 = vmatprep.subr.mxu0 0.0
    %536 = vmatpush2.msra.mxu0 0.0
    %537 = vmatprep.subr.mxu0 0.0
    %538 = vmatpush2.msra.mxu0 0.0
    %539 = vmatprep.subr.mxu0 0.0
    %540 = vmatpush2.msra.mxu0 0.0
    %541 = vmatprep.subr.mxu0 0.0
    %542 = vmatpush2.msra.mxu0 0.0
    %543 = vmatprep.subr.mxu0 0.0
    %544 = vmatpush2.msra.mxu0 0.0
    %545 = vmatprep.subr.mxu0 0.0
    %546 = vmatpush2.msra.mxu0 0.0
    %547 = vmatprep.subr.mxu0 0.0
    %548 = vmatpush2.msra.mxu0 0.0
    %549 = vmatprep.subr.mxu0 0.0
    %550 = vmatpush2.msra.mxu0 0.0
    %551 = vmatprep.mubr.f32.mxu0 0.0
    %552 = vmatmul.mubr.f32.gmra.mxu0 %v485
    %v553 = vpop.f32.mrf.mxu0
    %v554 = vadd.f32 0.0, %v553
    %v555 = vpop.f32.mrf.mxu0
    %556 = vdwg.mxu0
    %v558 = vrot.slane %v554, 4
    %v560 = vadd.f32 %v128, %v558
    %v561 = vxor.u32 %v560, 2147483648
    %v562 = vmul.f32 %v561, 1.442695
    %v563 = vpow.pop %v562
    %v564 = vadd.f32 %v563, 1.0
    %v565 = vrcp.pop %v564
    %v566 = vmul.f32 1.0, %v565
    %v567 = vadd.f32 %v554, %v230
    %v569 = vrot.slane %v567, 4
    %570 = vrot.lane.b32.xlu0 %v569, 64
    %v571 = vpop.permute.xlu0 %570
    %v573 = vmul.f32 %v566, %v571
    %575 = vrot.lane.b32.xlu0 %v573, 64
    %v576 = vpop.permute.xlu0 %575
    %v578 = vadd.f32 %v128, %v576
    %v579 = vtanh.pop %v578
    %v581 = vrot.slane %v579, 4
    %v583 = vsub.f32 %v481, %v581
    %v585 = vrot.slane %v583, 4
    %586 = vrot.lane.b32.xlu0 %v585, 96
    %v587 = vpop.permute.xlu0 %586
    %v589 = vmul.f32 %v566, %v587
    %591 = vrot.lane.b32.xlu0 %v589, 32
    %v592 = vpop.permute.xlu0 %591
    %v594 = vadd.f32 %v579, %v592
    %v596 = vrot.slane %v594, 4
    %597 = vrot.lane.b32.xlu0 %v596, 64
    %v598 = vpop.permute.xlu0 %597
    %v599 = vsel %vm148, %v598, 0
    %601 = vmatprep.subr.mxu0 0.0
    %602 = vmatpush1.msra.mxu0 0.0
    %603 = vmatprep.subr.mxu0 0.0
    %604 = vmatpush1.msra.mxu0 0.0
    %605 = vmatprep.subr.mxu0 0.0
    %606 = vmatpush1.msra.mxu0 0.0
    %607 = vmatprep.subr.mxu0 0.0
    %608 = vmatpush1.msra.mxu0 0.0
    %609 = vmatprep.subr.mxu0 0.0
    %610 = vmatpush1.msra.mxu0 0.0
    %611 = vmatprep.subr.mxu0 0.0
    %612 = vmatpush1.msra.mxu0 0.0
    %613 = vmatprep.subr.mxu0 0.0
    %614 = vmatpush1.msra.mxu0 0.0
    %615 = vmatprep.subr.mxu0 0.0
    %616 = vmatpush1.msra.mxu0 0.0
    %617 = vmatprep.subr.mxu0 0.0
    %618 = vmatpush1.msra.mxu0 0.0
    %619 = vmatprep.subr.mxu0 0.0
    %620 = vmatpush1.msra.mxu0 0.0
    %621 = vmatprep.subr.mxu0 0.0
    %622 = vmatpush1.msra.mxu0 0.0
    %623 = vmatprep.subr.mxu0 0.0
    %624 = vmatpush1.msra.mxu0 0.0
    %625 = vmatprep.subr.mxu0 0.0
    %626 = vmatpush1.msra.mxu0 %v29
    %627 = vmatprep.subr.mxu0 0.0
    %628 = vmatpush1.msra.mxu0 %v28
    %629 = vmatprep.subr.mxu0 0.0
    %630 = vmatpush1.msra.mxu0 %v27
    %631 = vmatprep.subr.mxu0 0.0
    %632 = vmatpush1.msra.mxu0 %v26
    %633 = vmatprep.subr.mxu0 0.0
    %634 = vmatpush2.msra.mxu0 0.0
    %635 = vmatprep.subr.mxu0 0.0
    %636 = vmatpush2.msra.mxu0 0.0
    %637 = vmatprep.subr.mxu0 0.0
    %638 = vmatpush2.msra.mxu0 0.0
    %639 = vmatprep.subr.mxu0 0.0
    %640 = vmatpush2.msra.mxu0 0.0
    %641 = vmatprep.subr.mxu0 0.0
    %642 = vmatpush2.msra.mxu0 0.0
    %643 = vmatprep.subr.mxu0 0.0
    %644 = vmatpush2.msra.mxu0 0.0
    %645 = vmatprep.subr.mxu0 0.0
    %646 = vmatpush2.msra.mxu0 0.0
    %647 = vmatprep.subr.mxu0 0.0
    %648 = vmatpush2.msra.mxu0 0.0
    %649 = vmatprep.subr.mxu0 0.0
    %650 = vmatpush2.msra.mxu0 0.0
    %651 = vmatprep.subr.mxu0 0.0
    %652 = vmatpush2.msra.mxu0 0.0
    %653 = vmatprep.subr.mxu0 0.0
    %654 = vmatpush2.msra.mxu0 0.0
    %655 = vmatprep.subr.mxu0 0.0
    %656 = vmatpush2.msra.mxu0 0.0
    %657 = vmatprep.subr.mxu0 0.0
    %658 = vmatpush2.msra.mxu0 0.0
    %659 = vmatprep.subr.mxu0 0.0
    %660 = vmatpush2.msra.mxu0 0.0
    %661 = vmatprep.subr.mxu0 0.0
    %662 = vmatpush2.msra.mxu0 0.0
    %663 = vmatprep.subr.mxu0 0.0
    %664 = vmatpush2.msra.mxu0 0.0
    %665 = vmatprep.mubr.f32.mxu0 0.0
    %666 = vmatmul.mubr.f32.gmra.mxu0 %v599
    %v667 = vpop.f32.mrf.mxu0
    %v668 = vadd.f32 0.0, %v667
    %v669 = vpop.f32.mrf.mxu0
    %670 = vdwg.mxu0
    %v671 = vadd.f32 %v133, %v668
    %v672 = vxor.u32 %v671, 2147483648
    %v673 = vmul.f32 %v672, 1.442695
    %v674 = vpow.pop %v673
    %v675 = vadd.f32 %v674, 1.0
    %v676 = vrcp.pop %v675
    %v677 = vmul.f32 1.0, %v676
    %v678 = vadd.f32 %v668, %v230
    %680 = vrot.lane.b32.xlu0 %v678, 64
    %v681 = vpop.permute.xlu0 %680
    %v683 = vmul.f32 %v677, %v681
    %685 = vrot.lane.b32.xlu0 %v683, 64
    %v686 = vpop.permute.xlu0 %685
    %v688 = vadd.f32 %v133, %v686
    %v689 = vtanh.pop %v688
    %v691 = vrot.slane %v689, 4
    %v693 = vsub.f32 %v594, %v691
    %v695 = vrot.slane %v693, 4
    %696 = vrot.lane.b32.xlu0 %v695, 96
    %v697 = vpop.permute.xlu0 %696
    %v699 = vmul.f32 %v677, %v697
    %701 = vrot.lane.b32.xlu0 %v699, 32
    %v702 = vpop.permute.xlu0 %701
    %v704 = vadd.f32 %v689, %v702
    %706 = vrot.lane.b32.xlu0 %v704, 64
    %v707 = vpop.permute.xlu0 %706
    %v708 = vsel %vm148, %v707, 0
    %710 = vmatprep.subr.mxu0 0.0
    %711 = vmatpush1.msra.mxu0 0.0
    %712 = vmatprep.subr.mxu0 0.0
    %713 = vmatpush1.msra.mxu0 0.0
    %714 = vmatprep.subr.mxu0 0.0
    %715 = vmatpush1.msra.mxu0 0.0
    %716 = vmatprep.subr.mxu0 0.0
    %717 = vmatpush1.msra.mxu0 0.0
    %718 = vmatprep.subr.mxu0 0.0
    %719 = vmatpush1.msra.mxu0 0.0
    %720 = vmatprep.subr.mxu0 0.0
    %721 = vmatpush1.msra.mxu0 0.0
    %722 = vmatprep.subr.mxu0 0.0
    %723 = vmatpush1.msra.mxu0 0.0
    %724 = vmatprep.subr.mxu0 0.0
    %725 = vmatpush1.msra.mxu0 0.0
    %726 = vmatprep.subr.mxu0 0.0
    %727 = vmatpush1.msra.mxu0 0.0
    %728 = vmatprep.subr.mxu0 0.0
    %729 = vmatpush1.msra.mxu0 0.0
    %730 = vmatprep.subr.mxu0 0.0
    %731 = vmatpush1.msra.mxu0 0.0
    %732 = vmatprep.subr.mxu0 0.0
    %733 = vmatpush1.msra.mxu0 0.0
    %734 = vmatprep.subr.mxu0 0.0
    %735 = vmatpush1.msra.mxu0 %v29
    %736 = vmatprep.subr.mxu0 0.0
    %737 = vmatpush1.msra.mxu0 %v28
    %738 = vmatprep.subr.mxu0 0.0
    %739 = vmatpush1.msra.mxu0 %v27
    %740 = vmatprep.subr.mxu0 0.0
    %741 = vmatpush1.msra.mxu0 %v26
    %742 = vmatprep.subr.mxu0 0.0
    %743 = vmatpush2.msra.mxu0 0.0
    %744 = vmatprep.subr.mxu0 0.0
    %745 = vmatpush2.msra.mxu0 0.0
    %746 = vmatprep.subr.mxu0 0.0
    %747 = vmatpush2.msra.mxu0 0.0
    %748 = vmatprep.subr.mxu0 0.0
    %749 = vmatpush2.msra.mxu0 0.0
    %750 = vmatprep.subr.mxu0 0.0
    %751 = vmatpush2.msra.mxu0 0.0
    %752 = vmatprep.subr.mxu0 0.0
    %753 = vmatpush2.msra.mxu0 0.0
    %754 = vmatprep.subr.mxu0 0.0
    %755 = vmatpush2.msra.mxu0 0.0
    %756 = vmatprep.subr.mxu0 0.0
    %757 = vmatpush2.msra.mxu0 0.0
    %758 = vmatprep.subr.mxu0 0.0
    %759 = vmatpush2.msra.mxu0 0.0
    %760 = vmatprep.subr.mxu0 0.0
    %761 = vmatpush2.msra.mxu0 0.0
    %762 = vmatprep.subr.mxu0 0.0
    %763 = vmatpush2.msra.mxu0 0.0
    %764 = vmatprep.subr.mxu0 0.0
    %765 = vmatpush2.msra.mxu0 0.0
    %766 = vmatprep.subr.mxu0 0.0
    %767 = vmatpush2.msra.mxu0 0.0
    %768 = vmatprep.subr.mxu0 0.0
    %769 = vmatpush2.msra.mxu0 0.0
    %770 = vmatprep.subr.mxu0 0.0
    %771 = vmatpush2.msra.mxu0 0.0
    %772 = vmatprep.subr.mxu0 0.0
    %773 = vmatpush2.msra.mxu0 0.0
    %774 = vmatprep.mubr.f32.mxu0 0.0
    %775 = vmatmul.mubr.f32.gmra.mxu0 %v708
    %v776 = vpop.f32.mrf.mxu0
    %v777 = vadd.f32 0.0, %v776
    %v778 = vpop.f32.mrf.mxu0
    %779 = vdwg.mxu0
    %v781 = vrot.slane %v777, 4
    %v783 = vadd.f32 %v133, %v781
    %v784 = vxor.u32 %v783, 2147483648
    %v785 = vmul.f32 %v784, 1.442695
    %v786 = vpow.pop %v785
    %v787 = vadd.f32 %v786, 1.0
    %v788 = vrcp.pop %v787
    %v789 = vmul.f32 1.0, %v788
    %v790 = vadd.f32 %v777, %v230
    %v792 = vrot.slane %v790, 4
    %793 = vrot.lane.b32.xlu0 %v792, 64
    %v794 = vpop.permute.xlu0 %793
    %v796 = vmul.f32 %v789, %v794
    %798 = vrot.lane.b32.xlu0 %v796, 64
    %v799 = vpop.permute.xlu0 %798
    %v801 = vadd.f32 %v133, %v799
    %v802 = vtanh.pop %v801
    %v804 = vrot.slane %v802, 4
    %v806 = vsub.f32 %v704, %v804
    %v808 = vrot.slane %v806, 4
    %809 = vrot.lane.b32.xlu0 %v808, 96
    %v810 = vpop.permute.xlu0 %809
    %v812 = vmul.f32 %v789, %v810
    %814 = vrot.lane.b32.xlu0 %v812, 32
    %v815 = vpop.permute.xlu0 %814
    %v817 = vadd.f32 %v802, %v815
    %v819 = vrot.slane %v817, 4
    %820 = vrot.lane.b32.xlu0 %v819, 64
    %v821 = vpop.permute.xlu0 %820
    %v822 = vsel %vm148, %v821, 0
    %824 = vmatprep.subr.mxu0 0.0
    %825 = vmatpush1.msra.mxu0 0.0
    %826 = vmatprep.subr.mxu0 0.0
    %827 = vmatpush1.msra.mxu0 0.0
    %828 = vmatprep.subr.mxu0 0.0
    %829 = vmatpush1.msra.mxu0 0.0
    %830 = vmatprep.subr.mxu0 0.0
    %831 = vmatpush1.msra.mxu0 0.0
    %832 = vmatprep.subr.mxu0 0.0
    %833 = vmatpush1.msra.mxu0 0.0
    %834 = vmatprep.subr.mxu0 0.0
    %835 = vmatpush1.msra.mxu0 0.0
    %836 = vmatprep.subr.mxu0 0.0
    %837 = vmatpush1.msra.mxu0 0.0
    %838 = vmatprep.subr.mxu0 0.0
    %839 = vmatpush1.msra.mxu0 0.0
    %840 = vmatprep.subr.mxu0 0.0
    %841 = vmatpush1.msra.mxu0 0.0
    %842 = vmatprep.subr.mxu0 0.0
    %843 = vmatpush1.msra.mxu0 0.0
    %844 = vmatprep.subr.mxu0 0.0
    %845 = vmatpush1.msra.mxu0 0.0
    %846 = vmatprep.subr.mxu0 0.0
    %847 = vmatpush1.msra.mxu0 0.0
    %848 = vmatprep.subr.mxu0 0.0
    %849 = vmatpush1.msra.mxu0 %v29
    %850 = vmatprep.subr.mxu0 0.0
    %851 = vmatpush1.msra.mxu0 %v28
    %852 = vmatprep.subr.mxu0 0.0
    %853 = vmatpush1.msra.mxu0 %v27
    %854 = vmatprep.subr.mxu0 0.0
    %855 = vmatpush1.msra.mxu0 %v26
    %856 = vmatprep.subr.mxu0 0.0
    %857 = vmatpush2.msra.mxu0 0.0
    %858 = vmatprep.subr.mxu0 0.0
    %859 = vmatpush2.msra.mxu0 0.0
    %860 = vmatprep.subr.mxu0 0.0
    %861 = vmatpush2.msra.mxu0 0.0
    %862 = vmatprep.subr.mxu0 0.0
    %863 = vmatpush2.msra.mxu0 0.0
    %864 = vmatprep.subr.mxu0 0.0
    %865 = vmatpush2.msra.mxu0 0.0
    %866 = vmatprep.subr.mxu0 0.0
    %867 = vmatpush2.msra.mxu0 0.0
    %868 = vmatprep.subr.mxu0 0.0
    %869 = vmatpush2.msra.mxu0 0.0
    %870 = vmatprep.subr.mxu0 0.0
    %871 = vmatpush2.msra.mxu0 0.0
    %872 = vmatprep.subr.mxu0 0.0
    %873 = vmatpush2.msra.mxu0 0.0
    %874 = vmatprep.subr.mxu0 0.0
    %875 = vmatpush2.msra.mxu0 0.0
    %876 = vmatprep.subr.mxu0 0.0
    %877 = vmatpush2.msra.mxu0 0.0
    %878 = vmatprep.subr.mxu0 0.0
    %879 = vmatpush2.msra.mxu0 0.0
    %880 = vmatprep.subr.mxu0 0.0
    %881 = vmatpush2.msra.mxu0 0.0
    %882 = vmatprep.subr.mxu0 0.0
    %883 = vmatpush2.msra.mxu0 0.0
    %884 = vmatprep.subr.mxu0 0.0
    %885 = vmatpush2.msra.mxu0 0.0
    %886 = vmatprep.subr.mxu0 0.0
    %887 = vmatpush2.msra.mxu0 0.0
    %888 = vmatprep.mubr.f32.mxu0 0.0
    %889 = vmatmul.mubr.f32.gmra.mxu0 %v822
    %v890 = vpop.f32.mrf.mxu0
    %v891 = vadd.f32 0.0, %v890
    %v892 = vpop.f32.mrf.mxu0
    %893 = vdwg.mxu0
    %v894 = vadd.f32 %v138, %v891
    %v895 = vxor.u32 %v894, 2147483648
    %v896 = vmul.f32 %v895, 1.442695
    %v897 = vpow.pop %v896
    %v898 = vadd.f32 %v897, 1.0
    %v899 = vrcp.pop %v898
    %v900 = vmul.f32 1.0, %v899
    %v901 = vadd.f32 %v891, %v230
    %903 = vrot.lane.b32.xlu0 %v901, 64
    %v904 = vpop.permute.xlu0 %903
    %v906 = vmul.f32 %v900, %v904
    %908 = vrot.lane.b32.xlu0 %v906, 64
    %v909 = vpop.permute.xlu0 %908
    %v911 = vadd.f32 %v138, %v909
    %v912 = vtanh.pop %v911
    %v914 = vrot.slane %v912, 4
    %v916 = vsub.f32 %v817, %v914
    %v918 = vrot.slane %v916, 4
    %919 = vrot.lane.b32.xlu0 %v918, 96
    %v920 = vpop.permute.xlu0 %919
    %v922 = vmul.f32 %v900, %v920
    %924 = vrot.lane.b32.xlu0 %v922, 32
    %v925 = vpop.permute.xlu0 %924
    %v927 = vadd.f32 %v912, %v925
    %929 = vrot.lane.b32.xlu0 %v927, 64
    %v930 = vpop.permute.xlu0 %929
    %v931 = vsel %vm148, %v930, 0
    %933 = vmatprep.subr.mxu0 0.0
    %934 = vmatpush1.msra.mxu0 0.0
    %935 = vmatprep.subr.mxu0 0.0
    %936 = vmatpush1.msra.mxu0 0.0
    %937 = vmatprep.subr.mxu0 0.0
    %938 = vmatpush1.msra.mxu0 0.0
    %939 = vmatprep.subr.mxu0 0.0
    %940 = vmatpush1.msra.mxu0 0.0
    %941 = vmatprep.subr.mxu0 0.0
    %942 = vmatpush1.msra.mxu0 0.0
    %943 = vmatprep.subr.mxu0 0.0
    %944 = vmatpush1.msra.mxu0 0.0
    %945 = vmatprep.subr.mxu0 0.0
    %946 = vmatpush1.msra.mxu0 0.0
    %947 = vmatprep.subr.mxu0 0.0
    %948 = vmatpush1.msra.mxu0 0.0
    %949 = vmatprep.subr.mxu0 0.0
    %950 = vmatpush1.msra.mxu0 0.0
    %951 = vmatprep.subr.mxu0 0.0
    %952 = vmatpush1.msra.mxu0 0.0
    %953 = vmatprep.subr.mxu0 0.0
    %954 = vmatpush1.msra.mxu0 0.0
    %955 = vmatprep.subr.mxu0 0.0
    %956 = vmatpush1.msra.mxu0 0.0
    %957 = vmatprep.subr.mxu0 0.0
    %958 = vmatpush1.msra.mxu0 %v29
    %959 = vmatprep.subr.mxu0 0.0
    %960 = vmatpush1.msra.mxu0 %v28
    %961 = vmatprep.subr.mxu0 0.0
    %962 = vmatpush1.msra.mxu0 %v27
    %963 = vmatprep.subr.mxu0 0.0
    %964 = vmatpush1.msra.mxu0 %v26
    %965 = vmatprep.subr.mxu0 0.0
    %966 = vmatpush2.msra.mxu0 0.0
    %967 = vmatprep.subr.mxu0 0.0
    %968 = vmatpush2.msra.mxu0 0.0
    %969 = vmatprep.subr.mxu0 0.0
    %970 = vmatpush2.msra.mxu0 0.0
    %971 = vmatprep.subr.mxu0 0.0
    %972 = vmatpush2.msra.mxu0 0.0
    %973 = vmatprep.subr.mxu0 0.0
    %974 = vmatpush2.msra.mxu0 0.0
    %975 = vmatprep.subr.mxu0 0.0
    %976 = vmatpush2.msra.mxu0 0.0
    %977 = vmatprep.subr.mxu0 0.0
    %978 = vmatpush2.msra.mxu0 0.0
    %979 = vmatprep.subr.mxu0 0.0
    %980 = vmatpush2.msra.mxu0 0.0
    %981 = vmatprep.subr.mxu0 0.0
    %982 = vmatpush2.msra.mxu0 0.0
    %983 = vmatprep.subr.mxu0 0.0
    %984 = vmatpush2.msra.mxu0 0.0
    %985 = vmatprep.subr.mxu0 0.0
    %986 = vmatpush2.msra.mxu0 0.0
    %987 = vmatprep.subr.mxu0 0.0
    %988 = vmatpush2.msra.mxu0 0.0
    %989 = vmatprep.subr.mxu0 0.0
    %990 = vmatpush2.msra.mxu0 0.0
    %991 = vmatprep.subr.mxu0 0.0
    %992 = vmatpush2.msra.mxu0 0.0
    %993 = vmatprep.subr.mxu0 0.0
    %994 = vmatpush2.msra.mxu0 0.0
    %995 = vmatprep.subr.mxu0 0.0
    %996 = vmatpush2.msra.mxu0 0.0
    %997 = vmatprep.mubr.f32.mxu0 0.0
    %998 = vmatmul.mubr.f32.gmra.mxu0 %v931
    %v999 = vpop.f32.mrf.mxu0
    %v1000 = vadd.f32 0.0, %v999
    %v1001 = vpop.f32.mrf.mxu0
    %1002 = vdwg.mxu0
    %v1004 = vrot.slane %v1000, 4
    %v1006 = vadd.f32 %v138, %v1004
    %v1007 = vxor.u32 %v1006, 2147483648
    %v1008 = vmul.f32 %v1007, 1.442695
    %v1009 = vpow.pop %v1008
    %v1010 = vadd.f32 %v1009, 1.0
    %v1011 = vrcp.pop %v1010
    %v1012 = vmul.f32 1.0, %v1011
    %v1013 = vadd.f32 %v1000, %v230
    %v1015 = vrot.slane %v1013, 4
    %1016 = vrot.lane.b32.xlu0 %v1015, 64
    %v1017 = vpop.permute.xlu0 %1016
    %v1019 = vmul.f32 %v1012, %v1017
    %1021 = vrot.lane.b32.xlu0 %v1019, 64
    %v1022 = vpop.permute.xlu0 %1021
    %v1024 = vadd.f32 %v138, %v1022
    %v1025 = vtanh.pop %v1024
    %v1027 = vrot.slane %v1025, 4
    %v1029 = vsub.f32 %v927, %v1027
    %v1031 = vrot.slane %v1029, 4
    %1032 = vrot.lane.b32.xlu0 %v1031, 96
    %v1033 = vpop.permute.xlu0 %1032
    %v1035 = vmul.f32 %v1012, %v1033
    %1037 = vrot.lane.b32.xlu0 %v1035, 32
    %v1038 = vpop.permute.xlu0 %1037
    %v1040 = vadd.f32 %v1025, %v1038
    %v1042 = vrot.slane %v1040, 4
    %1043 = vrot.lane.b32.xlu0 %v1042, 64
    %v1044 = vpop.permute.xlu0 %1043
    %vm1053 = vcmask 257024
    %1054 = vst.msk [vmem:[%s6] sm:$0xf] %vm1053, %v261
    %1055 = vst.msk [vmem:[%s6 + $0x4] sm:$0xf] %vm1053, %v375
    %1056 = vst.msk [vmem:[%s6 + $0x8] sm:$0xf] %vm1053, %v484
    %1057 = vst.msk [vmem:[%s6 + $0xc] sm:$0xf] %vm1053, %v598
    %1058 = vst.msk [vmem:[%s6 + $0x10] sm:$0xf] %vm1053, %v707
    %1059 = vst.msk [vmem:[%s6 + $0x14] sm:$0xf] %vm1053, %v821
    %1060 = vst.msk [vmem:[%s6 + $0x18] sm:$0xf] %vm1053, %v930
    %1061 = vst.msk [vmem:[%s6 + $0x1c] sm:$0xf] %vm1053, %v1044
    %1062 = vrot.lane.b32.xlu0 %v1040, 64
    %v1063 = vpop.permute.xlu0 %1062
    %vm1065 = vcmask 261124
    %1066 = vst.msk [vmem:[#allocation2 - $0x4] sm:$0xf0] %vm1065, %v1063
    // Predicated region
    $region26: #{gru_forward.1} parent=1 // pred_check
      _
    $region27: #{gru_forward.1} parent=1 // pred_check_branch
      %1068 = sbr.rel (0) target = $region29
    $region28: #{gru_forward.1} parent=1 // pred_region
      _
    $region29: #{gru_forward.1} parent=1 // pred_fallthru
      _
    // Predicated region
    $region30: #{gru_forward.1} parent=1 // pred_check
      _
    $region31: #{gru_forward.1} parent=1 // pred_check_branch
      %1070 = sbr.rel (0) target = $region33
    $region32: #{gru_forward.1} parent=1 // pred_region
      %s1072 = ssub.s32 64, 64
      %1073 = vsyncadd [#allocation3], %s1072
      %s1075 = sshll.u32 [#allocation2], 4
      %s1076 = int_to_ptr.vmem [resolvable:$true] %s1075
      %1078 = dma.vmem_to_hbm [thread:$0]  %s1076, 64, %s7, [#allocation3]
    $region33: #{gru_forward.1} parent=1 // pred_fallthru
      _
    // Predicated region
    $region34: #{gru_forward.1} parent=1 // pred_check
      _
    $region35: #{gru_forward.1} parent=1 // pred_check_branch
      %1080 = sbr.rel (0) target = $region37
    $region36: #{gru_forward.1} parent=1 // pred_region
      _
    $region37: #{gru_forward.1} parent=1 // pred_fallthru
      _
    // Predicated region
    $region38: #{gru_forward.1} parent=1 // pred_check
      _
    $region39: #{gru_forward.1} parent=1 // pred_check_branch
      %1082 = sbr.rel (0) target = $region41
    $region40: #{gru_forward.1} parent=1 // pred_region
      %1083 = dma.done [#allocation3], 64
    $region41: #{gru_forward.1} parent=1 // pred_fallthru
      _
    %1084 = vsyncpa [#allocation3], 1

</llo_original>
